<compile_context>
chip_gen: v7x
topology: tpu7x:2x2x1
jax: 0.10.0
libtpu: 0.0.40
codegen_flags: <defaults>
</compile_context>

<pallas_src>
import functools

import jax
import jax.numpy as jnp
from jax.experimental import pallas as pl
from jax.experimental.pallas import tpu as pltpu


# ---------------------------------------------------------------------------
# Kernel: all three AGFW streams + final fusion, one batch tile per grid step
# ---------------------------------------------------------------------------
def _hier_agfw_kernel(x_ref, w1_ref, b1_ref, w2_ref, b2_ref, wf_ref, bf_ref,
                      out_ref, h_ref, pk_ref, *, matmul_dtype):
    """
    x_ref  : (TB, R, 3D)  batch tile, three streams packed along lanes
    w1_ref : (3D, 3H)     block-diagonal layer-1 weight (all three attn MLPs)
    b1_ref : (1, 3H)      layer-1 biases (lane-concat per stream)
    w2_ref : (1, 3H)      layer-2 weights (output width 1 per stream)
    b2_ref : (1, 3)       layer-2 biases
    wf_ref : (3D, D)      final_fusion weight (torch weight transposed)
    bf_ref : (1, D)       final_fusion bias
    out_ref: (TB, SLAB)   [ fused | w_short | w_medium | w_long | pad(untouched) ]
    h_ref  : (TB*R, 3H)   VMEM scratch: relu(layer-1) activations
    pk_ref : (TB, 3D)     VMEM scratch: [out_short | out_medium | out_long]
    """
    TB, R, D3 = x_ref.shape
    D = D3 // 3
    H = w1_ref.shape[1] // 3
    mm = matmul_dtype
    approx = mm != jnp.float32            # EUP vrcp on the bf16 fast path only

    # ---- attention layer 1: all three streams in ONE MXU matmul -------------
    # (R is the full region dim of the array, and R % 8 == 0 in practice, so
    # this leading-dim reshape is a layout no-op.)
    x2 = x_ref[...].reshape(TB * R, D3)
    h = jnp.dot(x2.astype(mm), w1_ref[...].astype(mm),
                preferred_element_type=jnp.float32) + b1_ref[...]
    h_ref[...] = jnp.maximum(h, 0.0)      # park in VMEM -> bounded live range

    # ---- per-stream: score -> softmax -> weighted sum (VPU / small reduces) --
    for k in range(3):                                       # unrolled
        hk = h_ref[:, k * H:(k + 1) * H]                     # (TB*R, H) view load
        hw = hk * w2_ref[:, k * H:(k + 1) * H]               # layer-2 (N=1) as VPU mul
        s = jnp.sum(hw.reshape(TB, R, H), axis=-1) + b2_ref[:, k:k + 1]   # (TB, R)

        # softmax over regions (last axis)
        m = jnp.max(s, axis=-1, keepdims=True)
        e = jnp.exp(s - m)
        den = jnp.sum(e, axis=-1, keepdims=True)
        w = e * pl.reciprocal(den, approx=approx)            # (TB, R)

        # attention weights go straight into the output slab (no concat)
        out_ref[:, D + k * R:D + (k + 1) * R] = w

        # attention-weighted sum over regions; x is re-read here so it is not
        # held live across the layer-1 matmul + softmax above
        xk = x_ref[:, :, k * D:(k + 1) * D]                  # (TB, R, D)
        pk_ref[:, k * D:(k + 1) * D] = jnp.sum(w[:, :, None] * xk, axis=1)

    # ---- final fusion: ONE (TB, 3D) @ (3D, D) matmul + ReLU ------------------
    fused = jnp.dot(pk_ref[...].astype(mm), wf_ref[...].astype(mm),
                    preferred_element_type=jnp.float32) + bf_ref[...]
    out_ref[:, :D] = jnp.maximum(fused, 0.0)


# ---------------------------------------------------------------------------
# VMEM budgeting / batch-tile selection
# ---------------------------------------------------------------------------
def _vmem_capacity_bytes():
    try:
        return int(pltpu.get_tpu_info().vmem_capacity_bytes)
    except Exception:
        return 64 * 1024 * 1024          # v7x per-core VMEM: smallest current chip


def _pick_batch_tile(B, R, D, H, slab, vmem_budget_bytes):
    """Largest power-of-two batch tile dividing B whose (lane/sublane-padded,
    double-buffered) f32 working set fits the budget, capped so the grid has
    >= 2 steps whenever B allows it (keeps both v7x TensorCores busy)."""
    def pad(n, m):
        return -(-n // m) * m

    def step_bytes(tb):
        x = tb * pad(R, 8) * pad(3 * D, 128) * 4           # packed input tile
        o = pad(tb, 8) * pad(slab, 128) * 4                 # output slab tile
        h = pad(tb * R, 8) * pad(3 * H, 128) * 4            # layer-1 scratch
        pk = pad(tb, 8) * pad(3 * D, 128) * 4               # fusion-input scratch
        return 2 * (x + o) + h + pk                         # in/out double-buffered

    # grid-invariant weights (double-buffered by the default pipeline)
    w_res = 2 * 4 * (pad(3 * D, 8) * pad(3 * H, 128)        # block-diag W1
                     + 2 * 8 * pad(3 * H, 128)              # b1, w2
                     + 8 * 128                              # b2
                     + pad(3 * D, 8) * pad(D, 128)          # Wf
                     + 8 * pad(D, 128))                     # bf
    budget = max(vmem_budget_bytes - w_res, 1 << 20)

    best = None
    tb = 8
    while tb <= B:
        if B % tb == 0 and step_bytes(tb) <= budget and B // tb >= 2:
            best = tb
        tb *= 2
    if best is None:
        # tiny batch (B <= 8) or no fitting power-of-two divisor: one tile.
        best = B
    return best


# ---------------------------------------------------------------------------
# Wrapper
# ---------------------------------------------------------------------------
def _forward(short_feats, medium_feats, long_feats, params, *, matmul_dtype):
    B, R, D = short_feats.shape
    streams = (params["short"], params["medium"], params["long"])
    H = streams[0][0].shape[1]

    # Pack the three streams along lanes: one DMA stream instead of three
    # 128-lane-padded ones, and one big layer-1 matmul instead of three.
    x = jnp.concatenate([short_feats, medium_feats, long_feats], axis=-1)   # (B,R,3D)

    # Block-diagonal layer-1 weight so all three attention MLPs fuse into one
    # (TB*R, 3D) @ (3D, 3H) matmul.
    w1 = jnp.zeros((3 * D, 3 * H), jnp.float32)
    for k, s in enumerate(streams):
        w1 = w1.at[k * D:(k + 1) * D, k * H:(k + 1) * H].set(s[0])
    b1 = jnp.concatenate([s[1].reshape(1, H) for s in streams], axis=-1)    # (1, 3H)
    w2 = jnp.concatenate([s[2].reshape(1, H) for s in streams], axis=-1)    # (1, 3H)
    b2 = jnp.concatenate([s[3].reshape(1, 1) for s in streams], axis=-1)    # (1, 3)
    wf, bf = params["fusion"]                                               # (3D,D),(1,D)

    slab = -(-(D + 3 * R) // 128) * 128                     # lane-dense output width
    vmem_cap = _vmem_capacity_bytes()
    vmem_limit = min(int(0.70 * vmem_cap), 100 * 1024 * 1024)
    tb = _pick_batch_tile(B, R, D, H, slab, int(0.85 * vmem_limit))
    grid = (B // tb,)

    kernel = functools.partial(_hier_agfw_kernel, matmul_dtype=matmul_dtype)

    # NOTE: resident weight blocks are small here; if production D grows >= 512,
    # give their specs pipeline_mode=pl.Buffered(1) to avoid double-buffering.
    out = pl.pallas_call(
        kernel,
        out_shape=jax.ShapeDtypeStruct((B, slab), jnp.float32),
        grid=grid,
        in_specs=[
            pl.BlockSpec((tb, R, 3 * D), lambda i: (i, 0, 0)),
            pl.BlockSpec(w1.shape, lambda i: (0, 0)),
            pl.BlockSpec(b1.shape, lambda i: (0, 0)),
            pl.BlockSpec(w2.shape, lambda i: (0, 0)),
            pl.BlockSpec(b2.shape, lambda i: (0, 0)),
            pl.BlockSpec(wf.shape, lambda i: (0, 0)),
            pl.BlockSpec(bf.shape, lambda i: (0, 0)),
        ],
        out_specs=pl.BlockSpec((tb, slab), lambda i: (i, 0)),
        scratch_shapes=[
            pltpu.VMEM((tb * R, 3 * H), jnp.float32),        # relu(layer-1)
            pltpu.VMEM((tb, 3 * D), jnp.float32),            # fusion-matmul input
        ],
        compiler_params=pltpu.CompilerParams(
            dimension_semantics=("parallel",),               # batch tiles across TCs
            vmem_limit_bytes=vmem_limit),
    )(x, w1, b1, w2, b2, wf, bf)

    fused = out[:, :D]
    weights = {
        "short_weights": out[:, D:D + R].reshape(B, R, 1),
        "medium_weights": out[:, D + R:D + 2 * R].reshape(B, R, 1),
        "long_weights": out[:, D + 2 * R:D + 3 * R].reshape(B, R, 1),
    }
    return fused, weights


# bf16 matmuls (MXU-native on v5e/v6e/v7x); f32 path kept for strict parity.
hierarchical_agfw = jax.jit(functools.partial(_forward, matmul_dtype=jnp.bfloat16))
hierarchical_agfw_f32 = jax.jit(functools.partial(_forward, matmul_dtype=jnp.float32))


# ---------------------------------------------------------------------------
# Deterministic parameter init (synthetic; mimics nn.Linear shapes)
# ---------------------------------------------------------------------------
def init_params(key, input_dim, hidden_dim=64):
    keys = jax.random.split(key, 8)

    def linear(k, fan_in, fan_out):
        kw, kb = jax.random.split(k)
        bound = 1.0 / jnp.sqrt(fan_in)
        w = jax.random.uniform(kw, (fan_in, fan_out), jnp.float32, -bound, bound)
        b = jax.random.uniform(kb, (1, fan_out), jnp.float32, -bound, bound)
        return w, b

    def agfw_params(k1, k2):
        w1, b1 = linear(k1, input_dim, hidden_dim)
        w2, b2 = linear(k2, hidden_dim, 1)
        return (w1, b1, w2, b2)

    wf, bf = linear(keys[6], input_dim * 3, input_dim)
    return {
        "short": agfw_params(keys[0], keys[1]),
        "medium": agfw_params(keys[2], keys[3]),
        "long": agfw_params(keys[4], keys[5]),
        "fusion": (wf, bf),
    }


# ---------------------------------------------------------------------------
# Pure-JAX reference for correctness check
# ---------------------------------------------------------------------------
def _agfw_ref(x, w1, b1, w2, b2):
    h = jnp.maximum(x @ w1 + b1[0], 0.0)
    s = h @ w2 + b2[0]                      # (B, R, 1)
    w = jax.nn.softmax(s, axis=1)
    return (w * x).sum(axis=1), w


def _ref(short, medium, long_, params):
    so, ws = _agfw_ref(short, *params["short"])
    mo, wm = _agfw_ref(medium, *params["medium"])
    lo, wl = _agfw_ref(long_, *params["long"])
    c = jnp.concatenate([so, mo, lo], axis=-1)
    wf, bf = params["fusion"]
    fused = jnp.maximum(c @ wf + bf[0], 0.0)
    return fused, ws, wm, wl


# ---------------------------------------------------------------------------
if __name__ == "__main__":
    B, R, D, H = 2, 8, 32, 64

    key = jax.random.PRNGKey(0)
    k_p, k_s, k_m, k_l = jax.random.split(key, 4)

    params = init_params(k_p, D, H)
    short_feats = jax.random.normal(k_s, (B, R, D), jnp.float32)
    medium_feats = jax.random.normal(k_m, (B, R, D), jnp.float32)
    long_feats = jax.random.normal(k_l, (B, R, D), jnp.float32)

    ref_fused, ref_ws, ref_wm, ref_wl = _ref(short_feats, medium_feats, long_feats, params)

    # --- default bf16-matmul fast path (relaxed tolerance) -------------------
    fused, weights = hierarchical_agfw(short_feats, medium_feats, long_feats, params)
    jax.block_until_ready((fused, weights))
    assert jnp.allclose(fused, ref_fused, atol=5e-2, rtol=5e-2)
    assert jnp.allclose(weights["short_weights"], ref_ws, atol=5e-2, rtol=5e-2)
    assert jnp.allclose(weights["medium_weights"], ref_wm, atol=5e-2, rtol=5e-2)
    assert jnp.allclose(weights["long_weights"], ref_wl, atol=5e-2, rtol=5e-2)

    # --- strict f32 parity path ----------------------------------------------
    fused32, weights32 = hierarchical_agfw_f32(short_feats, medium_feats, long_feats, params)
    jax.block_until_ready((fused32, weights32))
    assert jnp.allclose(fused32, ref_fused, atol=1e-5, rtol=1e-5)
    assert jnp.allclose(weights32["short_weights"], ref_ws, atol=1e-5, rtol=1e-5)
    assert jnp.allclose(weights32["medium_weights"], ref_wm, atol=1e-5, rtol=1e-5)
    assert jnp.allclose(weights32["long_weights"], ref_wl, atol=1e-5, rtol=1e-5)

    print("KERNEL_OK")
</pallas_src>

<mosaic_0001>
module attributes {stable_mosaic.version = 11 : i64} {
  func.func @_hier_agfw_kernel(%arg0: i32, %arg1: memref<2x8x96xf32, #tpu.memory_space<vmem>>, %arg2: memref<96x192xf32, #tpu.memory_space<vmem>>, %arg3: memref<1x192xf32, #tpu.memory_space<vmem>>, %arg4: memref<1x192xf32, #tpu.memory_space<vmem>>, %arg5: memref<1x3xf32, #tpu.memory_space<vmem>>, %arg6: memref<96x32xf32, #tpu.memory_space<vmem>>, %arg7: memref<1x32xf32, #tpu.memory_space<vmem>>, %arg8: memref<2x128xf32, #tpu.memory_space<vmem>>, %arg9: memref<16x192xf32, #tpu.memory_space<vmem>>, %arg10: memref<2x96xf32, #tpu.memory_space<vmem>>) attributes {dimension_semantics = [#tpu.dimension_semantics<parallel>], iteration_bounds = array<i64: 1>, scalar_prefetch = 0 : i64, scratch_operands = 2 : i64, tpu.core_type = #tpu.core_type<tc>, window_params = [{transform_indices = @transform_0, window_bounds = array<i64: 2, 8, 96>}, {pipeline_mode = #tpu.pipeline_mode<synchronous>, transform_indices = @transform_1, window_bounds = array<i64: 96, 192>}, {pipeline_mode = #tpu.pipeline_mode<synchronous>, transform_indices = @transform_2, window_bounds = array<i64: 1, 192>}, {pipeline_mode = #tpu.pipeline_mode<synchronous>, transform_indices = @transform_3, window_bounds = array<i64: 1, 192>}, {pipeline_mode = #tpu.pipeline_mode<synchronous>, transform_indices = @transform_4, window_bounds = array<i64: 1, 3>}, {pipeline_mode = #tpu.pipeline_mode<synchronous>, transform_indices = @transform_5, window_bounds = array<i64: 96, 32>}, {pipeline_mode = #tpu.pipeline_mode<synchronous>, transform_indices = @transform_6, window_bounds = array<i64: 1, 32>}, {transform_indices = @transform_7, window_bounds = array<i64: 2, 128>}]} {
    %c0 = arith.constant 0 : index
    %c0_0 = arith.constant 0 : index
    %c0_1 = arith.constant 0 : index
    %0 = vector.load %arg1[%c0, %c0_0, %c0_1] : memref<2x8x96xf32, #tpu.memory_space<vmem>>, vector<2x8x96xf32>
    %1 = vector.shape_cast %0 : vector<2x8x96xf32> to vector<16x96xf32>
    %2 = arith.truncf %1 : vector<16x96xf32> to vector<16x96xbf16>
    %c0_2 = arith.constant 0 : index
    %c0_3 = arith.constant 0 : index
    %3 = vector.load %arg2[%c0_2, %c0_3] : memref<96x192xf32, #tpu.memory_space<vmem>>, vector<96x192xf32>
    %4 = arith.truncf %3 : vector<96x192xf32> to vector<96x192xbf16>
    %cst = arith.constant dense<0.000000e+00> : vector<16x192xf32>
    %5 = tpu.matmul %2, %4, %cst {dimension_numbers = #tpu.dot_dimension_numbers<[1], [0], [0], [1], [0, 0, 1, 1], [], []>} : vector<16x96xbf16>, vector<96x192xbf16>, vector<16x192xf32> -> vector<16x192xf32>
    %c0_4 = arith.constant 0 : index
    %c0_5 = arith.constant 0 : index
    %6 = vector.load %arg3[%c0_4, %c0_5] : memref<1x192xf32, #tpu.memory_space<vmem>>, vector<1x192xf32>
    %7 = vector.broadcast %6 : vector<1x192xf32> to vector<16x192xf32>
    %8 = arith.addf %5, %7 : vector<16x192xf32>
    %cst_6 = arith.constant 0.000000e+00 : f32
    %9 = vector.broadcast %cst_6 : f32 to vector<16x192xf32>
    %10 = arith.maximumf %8, %9 : vector<16x192xf32>
    %c0_7 = arith.constant 0 : index
    %c0_8 = arith.constant 0 : index
    %11 = vector.load %arg9[%c0_7, %c0_8] : memref<16x192xf32, #tpu.memory_space<vmem>>, vector<16x192xf32>
    tpu.vector_store %arg9[%c0_7, %c0_8], %10 {strides = array<i32>} : memref<16x192xf32, #tpu.memory_space<vmem>>, vector<16x192xf32>,
    %c0_9 = arith.constant 0 : index
    %c0_10 = arith.constant 0 : index
    %12 = vector.load %arg9[%c0_9, %c0_10] : memref<16x192xf32, #tpu.memory_space<vmem>>, vector<16x64xf32>
    %c0_11 = arith.constant 0 : index
    %c0_12 = arith.constant 0 : index
    %13 = vector.load %arg4[%c0_11, %c0_12] : memref<1x192xf32, #tpu.memory_space<vmem>>, vector<1x64xf32>
    %14 = vector.broadcast %13 : vector<1x64xf32> to vector<16x64xf32>
    %15 = arith.mulf %12, %14 : vector<16x64xf32>
    %16 = vector.shape_cast %15 : vector<16x64xf32> to vector<2x8x64xf32>
    %cst_13 = arith.constant dense<0.000000e+00> : vector<2x8xf32>
    %17 = vector.multi_reduction <add>, %16, %cst_13 [2] : vector<2x8x64xf32> to vector<2x8xf32>
    %c0_14 = arith.constant 0 : index
    %c0_15 = arith.constant 0 : index
    %18 = vector.load %arg5[%c0_14, %c0_15] : memref<1x3xf32, #tpu.memory_space<vmem>>, vector<1x1xf32>
    %19 = vector.broadcast %18 : vector<1x1xf32> to vector<2x8xf32>
    %20 = arith.addf %17, %19 : vector<2x8xf32>
    %cst_16 = arith.constant dense<0xFF800000> : vector<2xf32>
    %21 = vector.multi_reduction <maximumf>, %20, %cst_16 [1] : vector<2x8xf32> to vector<2xf32>
    %22 = vector.shape_cast %21 : vector<2xf32> to vector<2x1xf32>
    %23 = vector.broadcast %22 : vector<2x1xf32> to vector<2x8xf32>
    %24 = arith.subf %20, %23 : vector<2x8xf32>
    %25 = math.exp %24 : vector<2x8xf32>
    %cst_17 = arith.constant dense<0.000000e+00> : vector<2xf32>
    %26 = vector.multi_reduction <add>, %25, %cst_17 [1] : vector<2x8xf32> to vector<2xf32>
    %27 = vector.shape_cast %26 : vector<2xf32> to vector<2x1xf32>
    %28 = tpu.reciprocal %27 {approx = true} : vector<2x1xf32> -> vector<2x1xf32>
    %29 = vector.broadcast %28 : vector<2x1xf32> to vector<2x8xf32>
    %30 = arith.mulf %25, %29 : vector<2x8xf32>
    %c0_18 = arith.constant 0 : index
    %c32 = arith.constant 32 : index
    %31 = vector.load %arg8[%c0_18, %c32] : memref<2x128xf32, #tpu.memory_space<vmem>>, vector<2x8xf32>
    tpu.vector_store %arg8[%c0_18, %c32], %30 {strides = array<i32>} : memref<2x128xf32, #tpu.memory_space<vmem>>, vector<2x8xf32>,
    %c0_19 = arith.constant 0 : index
    %c0_20 = arith.constant 0 : index
    %c0_21 = arith.constant 0 : index
    %32 = vector.load %arg1[%c0_19, %c0_20, %c0_21] : memref<2x8x96xf32, #tpu.memory_space<vmem>>, vector<2x8x32xf32>
    %33 = vector.shape_cast %30 : vector<2x8xf32> to vector<2x8x1xf32>
    %34 = vector.broadcast %33 : vector<2x8x1xf32> to vector<2x8x32xf32>
    %35 = arith.mulf %34, %32 : vector<2x8x32xf32>
    %cst_22 = arith.constant dense<0.000000e+00> : vector<2x32xf32>
    %36 = vector.multi_reduction <add>, %35, %cst_22 [1] : vector<2x8x32xf32> to vector<2x32xf32>
    %c0_23 = arith.constant 0 : index
    %c0_24 = arith.constant 0 : index
    %37 = vector.load %arg10[%c0_23, %c0_24] : memref<2x96xf32, #tpu.memory_space<vmem>>, vector<2x32xf32>
    tpu.vector_store %arg10[%c0_23, %c0_24], %36 {strides = array<i32>} : memref<2x96xf32, #tpu.memory_space<vmem>>, vector<2x32xf32>,
    %c0_25 = arith.constant 0 : index
    %c64 = arith.constant 64 : index
    %38 = vector.load %arg9[%c0_25, %c64] : memref<16x192xf32, #tpu.memory_space<vmem>>, vector<16x64xf32>
    %c0_26 = arith.constant 0 : index
    %c64_27 = arith.constant 64 : index
    %39 = vector.load %arg4[%c0_26, %c64_27] : memref<1x192xf32, #tpu.memory_space<vmem>>, vector<1x64xf32>
    %40 = vector.broadcast %39 : vector<1x64xf32> to vector<16x64xf32>
    %41 = arith.mulf %38, %40 : vector<16x64xf32>
    %42 = vector.shape_cast %41 : vector<16x64xf32> to vector<2x8x64xf32>
    %cst_28 = arith.constant dense<0.000000e+00> : vector<2x8xf32>
    %43 = vector.multi_reduction <add>, %42, %cst_28 [2] : vector<2x8x64xf32> to vector<2x8xf32>
    %c0_29 = arith.constant 0 : index
    %c1 = arith.constant 1 : index
    %44 = vector.load %arg5[%c0_29, %c1] : memref<1x3xf32, #tpu.memory_space<vmem>>, vector<1x1xf32>
    %45 = vector.broadcast %44 : vector<1x1xf32> to vector<2x8xf32>
    %46 = arith.addf %43, %45 : vector<2x8xf32>
    %cst_30 = arith.constant dense<0xFF800000> : vector<2xf32>
    %47 = vector.multi_reduction <maximumf>, %46, %cst_30 [1] : vector<2x8xf32> to vector<2xf32>
    %48 = vector.shape_cast %47 : vector<2xf32> to vector<2x1xf32>
    %49 = vector.broadcast %48 : vector<2x1xf32> to vector<2x8xf32>
    %50 = arith.subf %46, %49 : vector<2x8xf32>
    %51 = math.exp %50 : vector<2x8xf32>
    %cst_31 = arith.constant dense<0.000000e+00> : vector<2xf32>
    %52 = vector.multi_reduction <add>, %51, %cst_31 [1] : vector<2x8xf32> to vector<2xf32>
    %53 = vector.shape_cast %52 : vector<2xf32> to vector<2x1xf32>
    %54 = tpu.reciprocal %53 {approx = true} : vector<2x1xf32> -> vector<2x1xf32>
    %55 = vector.broadcast %54 : vector<2x1xf32> to vector<2x8xf32>
    %56 = arith.mulf %51, %55 : vector<2x8xf32>
    %c0_32 = arith.constant 0 : index
    %c40 = arith.constant 40 : index
    %57 = vector.load %arg8[%c0_32, %c40] : memref<2x128xf32, #tpu.memory_space<vmem>>, vector<2x8xf32>
    tpu.vector_store %arg8[%c0_32, %c40], %56 {strides = array<i32>} : memref<2x128xf32, #tpu.memory_space<vmem>>, vector<2x8xf32>,
    %c0_33 = arith.constant 0 : index
    %c0_34 = arith.constant 0 : index
    %c32_35 = arith.constant 32 : index
    %58 = vector.load %arg1[%c0_33, %c0_34, %c32_35] : memref<2x8x96xf32, #tpu.memory_space<vmem>>, vector<2x8x32xf32>
    %59 = vector.shape_cast %56 : vector<2x8xf32> to vector<2x8x1xf32>
    %60 = vector.broadcast %59 : vector<2x8x1xf32> to vector<2x8x32xf32>
    %61 = arith.mulf %60, %58 : vector<2x8x32xf32>
    %cst_36 = arith.constant dense<0.000000e+00> : vector<2x32xf32>
    %62 = vector.multi_reduction <add>, %61, %cst_36 [1] : vector<2x8x32xf32> to vector<2x32xf32>
    %c0_37 = arith.constant 0 : index
    %c32_38 = arith.constant 32 : index
    %63 = vector.load %arg10[%c0_37, %c32_38] : memref<2x96xf32, #tpu.memory_space<vmem>>, vector<2x32xf32>
    tpu.vector_store %arg10[%c0_37, %c32_38], %62 {strides = array<i32>} : memref<2x96xf32, #tpu.memory_space<vmem>>, vector<2x32xf32>,
    %c0_39 = arith.constant 0 : index
    %c128 = arith.constant 128 : index
    %64 = vector.load %arg9[%c0_39, %c128] : memref<16x192xf32, #tpu.memory_space<vmem>>, vector<16x64xf32>
    %c0_40 = arith.constant 0 : index
    %c128_41 = arith.constant 128 : index
    %65 = vector.load %arg4[%c0_40, %c128_41] : memref<1x192xf32, #tpu.memory_space<vmem>>, vector<1x64xf32>
    %66 = vector.broadcast %65 : vector<1x64xf32> to vector<16x64xf32>
    %67 = arith.mulf %64, %66 : vector<16x64xf32>
    %68 = vector.shape_cast %67 : vector<16x64xf32> to vector<2x8x64xf32>
    %cst_42 = arith.constant dense<0.000000e+00> : vector<2x8xf32>
    %69 = vector.multi_reduction <add>, %68, %cst_42 [2] : vector<2x8x64xf32> to vector<2x8xf32>
    %c0_43 = arith.constant 0 : index
    %c2 = arith.constant 2 : index
    %70 = vector.load %arg5[%c0_43, %c2] : memref<1x3xf32, #tpu.memory_space<vmem>>, vector<1x1xf32>
    %71 = vector.broadcast %70 : vector<1x1xf32> to vector<2x8xf32>
    %72 = arith.addf %69, %71 : vector<2x8xf32>
    %cst_44 = arith.constant dense<0xFF800000> : vector<2xf32>
    %73 = vector.multi_reduction <maximumf>, %72, %cst_44 [1] : vector<2x8xf32> to vector<2xf32>
    %74 = vector.shape_cast %73 : vector<2xf32> to vector<2x1xf32>
    %75 = vector.broadcast %74 : vector<2x1xf32> to vector<2x8xf32>
    %76 = arith.subf %72, %75 : vector<2x8xf32>
    %77 = math.exp %76 : vector<2x8xf32>
    %cst_45 = arith.constant dense<0.000000e+00> : vector<2xf32>
    %78 = vector.multi_reduction <add>, %77, %cst_45 [1] : vector<2x8xf32> to vector<2xf32>
    %79 = vector.shape_cast %78 : vector<2xf32> to vector<2x1xf32>
    %80 = tpu.reciprocal %79 {approx = true} : vector<2x1xf32> -> vector<2x1xf32>
    %81 = vector.broadcast %80 : vector<2x1xf32> to vector<2x8xf32>
    %82 = arith.mulf %77, %81 : vector<2x8xf32>
    %c0_46 = arith.constant 0 : index
    %c48 = arith.constant 48 : index
    %83 = vector.load %arg8[%c0_46, %c48] : memref<2x128xf32, #tpu.memory_space<vmem>>, vector<2x8xf32>
    tpu.vector_store %arg8[%c0_46, %c48], %82 {strides = array<i32>} : memref<2x128xf32, #tpu.memory_space<vmem>>, vector<2x8xf32>,
    %c0_47 = arith.constant 0 : index
    %c0_48 = arith.constant 0 : index
    %c64_49 = arith.constant 64 : index
    %84 = vector.load %arg1[%c0_47, %c0_48, %c64_49] : memref<2x8x96xf32, #tpu.memory_space<vmem>>, vector<2x8x32xf32>
    %85 = vector.shape_cast %82 : vector<2x8xf32> to vector<2x8x1xf32>
    %86 = vector.broadcast %85 : vector<2x8x1xf32> to vector<2x8x32xf32>
    %87 = arith.mulf %86, %84 : vector<2x8x32xf32>
    %cst_50 = arith.constant dense<0.000000e+00> : vector<2x32xf32>
    %88 = vector.multi_reduction <add>, %87, %cst_50 [1] : vector<2x8x32xf32> to vector<2x32xf32>
    %c0_51 = arith.constant 0 : index
    %c64_52 = arith.constant 64 : index
    %89 = vector.load %arg10[%c0_51, %c64_52] : memref<2x96xf32, #tpu.memory_space<vmem>>, vector<2x32xf32>
    tpu.vector_store %arg10[%c0_51, %c64_52], %88 {strides = array<i32>} : memref<2x96xf32, #tpu.memory_space<vmem>>, vector<2x32xf32>,
    %c0_53 = arith.constant 0 : index
    %c0_54 = arith.constant 0 : index
    %90 = vector.load %arg10[%c0_53, %c0_54] : memref<2x96xf32, #tpu.memory_space<vmem>>, vector<2x96xf32>
    %91 = arith.truncf %90 : vector<2x96xf32> to vector<2x96xbf16>
    %c0_55 = arith.constant 0 : index
    %c0_56 = arith.constant 0 : index
    %92 = vector.load %arg6[%c0_55, %c0_56] : memref<96x32xf32, #tpu.memory_space<vmem>>, vector<96x32xf32>
    %93 = arith.truncf %92 : vector<96x32xf32> to vector<96x32xbf16>
    %cst_57 = arith.constant dense<0.000000e+00> : vector<2x32xf32>
    %94 = tpu.matmul %91, %93, %cst_57 {dimension_numbers = #tpu.dot_dimension_numbers<[1], [0], [0], [1], [0, 0, 1, 1], [], []>} : vector<2x96xbf16>, vector<96x32xbf16>, vector<2x32xf32> -> vector<2x32xf32>
    %c0_58 = arith.constant 0 : index
    %c0_59 = arith.constant 0 : index
    %95 = vector.load %arg7[%c0_58, %c0_59] : memref<1x32xf32, #tpu.memory_space<vmem>>, vector<1x32xf32>
    %96 = vector.broadcast %95 : vector<1x32xf32> to vector<2x32xf32>
    %97 = arith.addf %94, %96 : vector<2x32xf32>
    %cst_60 = arith.constant 0.000000e+00 : f32
    %98 = vector.broadcast %cst_60 : f32 to vector<2x32xf32>
    %99 = arith.maximumf %97, %98 : vector<2x32xf32>
    %c0_61 = arith.constant 0 : index
    %c0_62 = arith.constant 0 : index
    %100 = vector.load %arg8[%c0_61, %c0_62] : memref<2x128xf32, #tpu.memory_space<vmem>>, vector<2x32xf32>
    tpu.vector_store %arg8[%c0_61, %c0_62], %99 {strides = array<i32>} : memref<2x128xf32, #tpu.memory_space<vmem>>, vector<2x32xf32>,
    return
  }
  func.func @transform_0(%arg0: i32) -> (i32, i32, i32) {
    %c0_i32 = arith.constant 0 : i32
    %c0_i32_0 = arith.constant 0 : i32
    %c0_i32_1 = arith.constant 0 : i32
    return %arg0, %c0_i32, %c0_i32_0 : i32, i32, i32
  }
  func.func @transform_1(%arg0: i32) -> (i32, i32) {
    %c0_i32 = arith.constant 0 : i32
    %c0_i32_0 = arith.constant 0 : i32
    %c0_i32_1 = arith.constant 0 : i32
    return %c0_i32, %c0_i32_0 : i32, i32
  }
  func.func @transform_2(%arg0: i32) -> (i32, i32) {
    %c0_i32 = arith.constant 0 : i32
    %c0_i32_0 = arith.constant 0 : i32
    %c0_i32_1 = arith.constant 0 : i32
    return %c0_i32, %c0_i32_0 : i32, i32
  }
  func.func @transform_3(%arg0: i32) -> (i32, i32) {
    %c0_i32 = arith.constant 0 : i32
    %c0_i32_0 = arith.constant 0 : i32
    %c0_i32_1 = arith.constant 0 : i32
    return %c0_i32, %c0_i32_0 : i32, i32
  }
  func.func @transform_4(%arg0: i32) -> (i32, i32) {
    %c0_i32 = arith.constant 0 : i32
    %c0_i32_0 = arith.constant 0 : i32
    %c0_i32_1 = arith.constant 0 : i32
    return %c0_i32, %c0_i32_0 : i32, i32
  }
  func.func @transform_5(%arg0: i32) -> (i32, i32) {
    %c0_i32 = arith.constant 0 : i32
    %c0_i32_0 = arith.constant 0 : i32
    %c0_i32_1 = arith.constant 0 : i32
    return %c0_i32, %c0_i32_0 : i32, i32
  }
  func.func @transform_6(%arg0: i32) -> (i32, i32) {
    %c0_i32 = arith.constant 0 : i32
    %c0_i32_0 = arith.constant 0 : i32
    %c0_i32_1 = arith.constant 0 : i32
    return %c0_i32, %c0_i32_0 : i32, i32
  }
  func.func @transform_7(%arg0: i32) -> (i32, i32) {
    %c0_i32 = arith.constant 0 : i32
    %c0_i32_0 = arith.constant 0 : i32
    return %arg0, %c0_i32 : i32, i32
  }
}

</mosaic_0001>

<llo_original>
// kernel: _forward.1
$region0: #{_forward.1}
  #allocation0 [shape = 'u32[]', space=smem, size = 0x4, offset = 0x4, fixed_abs, tag = 'smem constant byte address 0x4 - core index']
  #allocation1 [shape = 'u32[144,128]{1,0:T(1,128)}', space=vmem, size = 0x12000, scoped, tag = 'internal scratch']
  #allocation2 [shape = 'f32[16,192]{1,0:T(8,128)}', space=vmem, size = 0x4000, scoped, tag = 'scratch operand']
  #allocation3 [shape = 'f32[2,96]{1,0:T(2,128)}', space=vmem, size = 0x400, scoped, tag = 'scratch operand']
  %s0 = inlined_call_operand.vmem [shape: f32[2,8,96], index: 0, kind: input, shape index: {}]
  %s1 = inlined_call_operand.vmem [shape: f32[96,192], index: 1, kind: input, shape index: {}]
  %s2 = inlined_call_operand.vmem [shape: f32[1,192], index: 2, kind: input, shape index: {}]
  %s3 = inlined_call_operand.vmem [shape: f32[1,192], index: 3, kind: input, shape index: {}]
  %s4 = inlined_call_operand.vmem [shape: f32[1,3], index: 4, kind: input, shape index: {}]
  %s5 = inlined_call_operand.vmem [shape: f32[96,32], index: 5, kind: input, shape index: {}]
  %s6 = inlined_call_operand.vmem [shape: f32[1,32], index: 6, kind: input, shape index: {}]
  %s7 = inlined_call_operand.vmem [shape: f32[2,128], index: 7, kind: output, shape index: {}]
  %s8 = sld [smem:[#allocation0]]
  $region38: #{_forward.1} parent=0
    _
  %s10 = ssub.s32 1, %s8
  %s11 = scalar_select 0, %s10, %s8
  // Predicated region
  $region2: #{_forward.1} parent=0 // pred_check
    _
  $region3: #{_forward.1} parent=0 // pred_check_branch
    %13 = sbr.rel (0) target = $region5
  $region4: #{_forward.1} parent=0 // pred_region
    _
  $region5: #{_forward.1} parent=0 // pred_fallthru
    _
  // Predicated region
  $region6: #{_forward.1} parent=0 // pred_check
    _
  $region7: #{_forward.1} parent=0 // pred_check_branch
    %15 = sbr.rel (0) target = $region9
  $region8: #{_forward.1} parent=0 // pred_region
    _
  $region9: #{_forward.1} parent=0 // pred_fallthru
    _
  // Predicated region
  $region10: #{_forward.1} parent=0 // pred_check
    _
  $region11: #{_forward.1} parent=0 // pred_check_branch
    %17 = sbr.rel (0) target = $region13
  $region12: #{_forward.1} parent=0 // pred_region
    _
  $region13: #{_forward.1} parent=0 // pred_fallthru
    _
  // Predicated region
  $region14: #{_forward.1} parent=0 // pred_check
    _
  $region15: #{_forward.1} parent=0 // pred_check_branch
    %19 = sbr.rel (0) target = $region17
  $region16: #{_forward.1} parent=0 // pred_region
    _
  $region17: #{_forward.1} parent=0 // pred_fallthru
    _
  // Predicated region
  $region18: #{_forward.1} parent=0 // pred_check
    _
  $region19: #{_forward.1} parent=0 // pred_check_branch
    %21 = sbr.rel (0) target = $region21
  $region20: #{_forward.1} parent=0 // pred_region
    _
  $region21: #{_forward.1} parent=0 // pred_fallthru
    _
  // Predicated region
  $region22: #{_forward.1} parent=0 // pred_check
    _
  $region23: #{_forward.1} parent=0 // pred_check_branch
    %23 = sbr.rel (0) target = $region25
  $region24: #{_forward.1} parent=0 // pred_region
    _
  $region25: #{_forward.1} parent=0 // pred_fallthru
    _
  // Predicated region
  $region26: #{_forward.1} parent=0 // pred_check
    _
  $region27: #{_forward.1} parent=0 // pred_check_branch
    %25 = sbr.rel (0) target = $region29
  $region28: #{_forward.1} parent=0 // pred_region
    _
  $region29: #{_forward.1} parent=0 // pred_fallthru
    _
  %v27 = vld [vmem:[%s0] sm:$0xff]
  %v28 = vld [vmem:[%s0 + $0x8] sm:$0xff]
  %v29 = vpack.c.bf16 %v28, %v27
  %v30 = vld [vmem:[%s1] sm:$0xff]
  %v31 = vld [vmem:[%s1 + $0x8] sm:$0xff]
  %v32 = vld [vmem:[%s1 + $0x10] sm:$0xff]
  %v33 = vld [vmem:[%s1 + $0x18] sm:$0xff]
  %v34 = vld [vmem:[%s1 + $0x20] sm:$0xff]
  %v35 = vld [vmem:[%s1 + $0x28] sm:$0xff]
  %v36 = vld [vmem:[%s1 + $0x30] sm:$0xff]
  %v37 = vld [vmem:[%s1 + $0x38] sm:$0xff]
  %v38 = vld [vmem:[%s1 + $0x40] sm:$0xff]
  %v39 = vld [vmem:[%s1 + $0x48] sm:$0xff]
  %v40 = vld [vmem:[%s1 + $0x50] sm:$0xff]
  %v41 = vld [vmem:[%s1 + $0x58] sm:$0xff]
  %v42 = vld [vmem:[%s1 + $0x60] sm:$0xff]
  %v43 = vld [vmem:[%s1 + $0x68] sm:$0xff]
  %v44 = vld [vmem:[%s1 + $0x70] sm:$0xff]
  %v45 = vld [vmem:[%s1 + $0x78] sm:$0xff]
  %v46 = vld [vmem:[%s1 + $0x80] sm:$0xff]
  %v47 = vld [vmem:[%s1 + $0x88] sm:$0xff]
  %v48 = vld [vmem:[%s1 + $0x90] sm:$0xff]
  %v49 = vld [vmem:[%s1 + $0x98] sm:$0xff]
  %v50 = vld [vmem:[%s1 + $0xa0] sm:$0xff]
  %v51 = vld [vmem:[%s1 + $0xa8] sm:$0xff]
  %v52 = vld [vmem:[%s1 + $0xb0] sm:$0xff]
  %v53 = vld [vmem:[%s1 + $0xb8] sm:$0xff]
  %v54 = vpack.c.bf16 %v32, %v30
  %v55 = vpack.c.bf16 %v33, %v31
  %v56 = vpack.c.bf16 %v36, %v34
  %v57 = vpack.c.bf16 %v37, %v35
  %v58 = vpack.c.bf16 %v40, %v38
  %v59 = vpack.c.bf16 %v41, %v39
  %v60 = vpack.c.bf16 %v44, %v42
  %v61 = vpack.c.bf16 %v45, %v43
  %v62 = vpack.c.bf16 %v48, %v46
  %v63 = vpack.c.bf16 %v49, %v47
  %v64 = vpack.c.bf16 %v52, %v50
  %v65 = vpack.c.bf16 %v53, %v51
  %v66 = vld [vmem:[%s2] sm:$0x3]
  %v68 = vlaneseq
  %v69 = vshrl.u32 %v68, 7
  %v70 = vsub.s32 0, %v69
  %v71 = vrot.slane %v66, %v70
  %v72 = vlaneseq
  %v73 = vshrl.u32 %v72, 7
  %v74 = vsub.s32 1, %v73
  %v75 = vrot.slane %v66, %v74
  %vm78 = vcmask 785408
  %v80 = vsel %vm78, %v29, 0
  %82 = vmatprep.subr.bf16.mxu0 %v55
  %83 = vmatpush1.bf16.msra.mxu0 %v54
  %84 = vmatprep.subr.bf16.mxu0 %v57
  %85 = vmatpush1.bf16.msra.mxu0 %v56
  %86 = vmatprep.subr.bf16.mxu0 %v59
  %87 = vmatpush1.bf16.msra.mxu0 %v58
  %88 = vmatprep.subr.bf16.mxu0 %v61
  %89 = vmatpush1.bf16.msra.mxu0 %v60
  %90 = vmatprep.subr.bf16.mxu0 %v63
  %91 = vmatpush1.bf16.msra.mxu0 %v62
  %92 = vmatprep.subr.bf16.mxu0 %v65
  %93 = vmatpush1.bf16.msra.mxu0 %v64
  %94 = vmatprep.subr.bf16.mxu0 0
  %95 = vmatpush1.bf16.msra.mxu0 0
  %96 = vmatprep.subr.bf16.mxu0 0
  %97 = vmatpush1.bf16.msra.mxu0 0
  %98 = vmatprep.subr.bf16.mxu0 0
  %99 = vmatpush1.bf16.msra.mxu0 0
  %100 = vmatprep.subr.bf16.mxu0 0
  %101 = vmatpush1.bf16.msra.mxu0 0
  %102 = vmatprep.subr.bf16.mxu0 0
  %103 = vmatpush1.bf16.msra.mxu0 0
  %104 = vmatprep.subr.bf16.mxu0 0
  %105 = vmatpush1.bf16.msra.mxu0 0
  %106 = vmatprep.subr.bf16.mxu0 0
  %107 = vmatpush1.bf16.msra.mxu0 0
  %108 = vmatprep.subr.bf16.mxu0 0
  %109 = vmatpush1.bf16.msra.mxu0 0
  %110 = vmatprep.subr.bf16.mxu0 0
  %111 = vmatpush1.bf16.msra.mxu0 0
  %112 = vmatprep.subr.bf16.mxu0 0
  %113 = vmatpush1.bf16.msra.mxu0 0
  %114 = vmatprep.mubr.bf16.mxu0 0
  %115 = vmatmul.mubr.bf16.gmra.mrb[0].mxu0 %v80
  %v116 = vpop.f32.mrb[0].mxu0
  %v117 = vadd.f32 %v71, %v116
  %v118 = vpop.f32.mrb[0].mxu0
  %v119 = vadd.f32 %v75, %v118
  %v120 = vpop.f32.mrb[0].mxu0
  %v121 = vadd.f32 %v71, %v120
  %v122 = vpop.f32.mrb[0].mxu0
  %v123 = vadd.f32 %v75, %v122
  %124 = vdwg.mxu0
  %v125 = vmax.f32 %v117, 0.0
  %v126 = vmax.f32 %v119, 0.0
  %v127 = vmax.f32 %v121, 0.0
  %v128 = vmax.f32 %v123, 0.0
  %129 = vst [vmem:[#allocation2] sm:$0xff] %v125
  %vm130 = vcmask 523264
  %131 = vst.msk [vmem:[#allocation2 + $0x8] sm:$0xff] %vm130, %v126
  %132 = vst [vmem:[#allocation2 + $0x10] sm:$0xff] %v127
  %133 = vst.msk [vmem:[#allocation2 + $0x18] sm:$0xff] %vm130, %v128
  %v134 = vld [vmem:[#allocation2] sm:$0xff]
  %v135 = vld [vmem:[#allocation2 + $0x10] sm:$0xff]
  %v136 = vld [vmem:[%s3] sm:$0x1]
  %v138 = vlaneseq
  %v139 = vshrl.u32 %v138, 7
  %v140 = vsub.s32 0, %v139
  %v141 = vrot.slane %v136, %v140
  %v143 = vmul.f32 %v134, %v141
  %v144 = vmul.f32 %v135, %v141
  %v145 = vsel %vm130, %v143, 0.0
  %146 = vadd.xlane.f32.xlu0 %v145
  %v147 = vpop.xlane.xlu0 %146
  %v148 = vsel %vm130, %v144, 0.0
  %149 = vadd.xlane.f32.xlu0 %v148
  %v150 = vpop.xlane.xlu0 %149
  %v151 = vld [vmem:[%s4] sm:$0x1]
  %v153 = vlaneseq
  %v154 = vshrl.u32 %v153, 7
  %v155 = vsub.s32 0, %v154
  %v156 = vrot.slane %v151, %v155
  %157 = vset.pattern.permute.xlu0 0
  %158 = vperm.xlu0 %157, %v156
  %v159 = vpop.permute.xlu0 %158
  %v161 = vadd.f32 %v147, %v159
  %v162 = vadd.f32 %v150, %v159
  %v165 = vlaneseq
  %v166 = vand.u32 %v165, 127
  %v167 = vlaneseq
  %v168 = vshrl.u32 %v167, 7
  %v169 = vsub.s32 %v166, %v168
  %v170 = vrot.slane %v161, %v169
  %v171 = vlaneseq
  %v172 = vshrl.u32 %v171, 7
  %v173 = vsub.s32 %v166, %v172
  %v174 = vrot.slane %v162, %v173
  %vm175 = vcmask 1041409
  %v176 = vsel %vm175, %v174, %v170
  %vm178 = vcmask 58368
  %v179 = vsel %vm178, %v176, -inf
  %180 = vmax.xlane.f32.xlu0 %v179
  %v181 = vpop.xlane.xlu0 %180
  %v183 = vlaneseq
  %v184 = vshrl.u32 %v183, 7
  %v185 = vsub.s32 0, %v184
  %v186 = vrot.slane %v181, %v185
  %v187 = vlaneseq
  %v188 = vshrl.u32 %v187, 7
  %v189 = vsub.s32 1, %v188
  %v190 = vrot.slane %v181, %v189
  %v193 = vsub.f32 %v161, %v186
  %v194 = vsub.f32 %v162, %v190
  %v195 = vmul.f32 %v193, 1.442695
  %v196 = vpow.pop %v195
  %v197 = vmul.f32 %v194, 1.442695
  %v198 = vpow.pop %v197
  %201 = vset.pattern.permute.xlu0 0
  %202 = vperm.xlu0 %201, %v196
  %v203 = vpop.permute.xlu0 %202
  %204 = vset.pattern.permute.xlu0 0
  %205 = vperm.xlu0 %204, %v198
  %v206 = vpop.permute.xlu0 %205
  %v207 = vlaneseq
  %v208 = vshrl.u32 %v207, 7
  %v209 = vsub.s32 %v166, %v208
  %v210 = vrot.slane %v203, %v209
  %v211 = vlaneseq
  %v212 = vshrl.u32 %v211, 7
  %v213 = vsub.s32 %v166, %v212
  %v214 = vrot.slane %v206, %v213
  %v215 = vsel %vm175, %v214, %v210
  %v217 = vsel %vm178, %v215, 0.0
  %218 = vadd.xlane.f32.xlu0 %v217
  %v219 = vpop.xlane.xlu0 %218
  %v220 = vrcp.pop %v219
  %v222 = vlaneseq
  %v223 = vshrl.u32 %v222, 7
  %v224 = vsub.s32 0, %v223
  %v225 = vrot.slane %v220, %v224
  %v226 = vlaneseq
  %v227 = vshrl.u32 %v226, 7
  %v228 = vsub.s32 1, %v227
  %v229 = vrot.slane %v220, %v228
  %v232 = vmul.f32 %v196, %v225
  %v233 = vmul.f32 %v198, %v229
  %236 = vset.pattern.permute.xlu0 0
  %237 = vperm.xlu0 %236, %v232
  %v238 = vpop.permute.xlu0 %237
  %239 = vset.pattern.permute.xlu0 0
  %240 = vperm.xlu0 %239, %v233
  %v241 = vpop.permute.xlu0 %240
  %v242 = vadd.s32 %v166, 4294967264
  %v243 = vlaneseq
  %v244 = vshrl.u32 %v243, 7
  %v245 = vsub.s32 %v242, %v244
  %v246 = vrot.slane %v238, %v245
  %v247 = vlaneseq
  %v248 = vshrl.u32 %v247, 7
  %v249 = vsub.s32 %v242, %v248
  %v250 = vrot.slane %v241, %v249
  %v251 = vsel %vm175, %v250, %v246
  %vm253 = vcmask 320768
  %254 = vst.msk [vmem:[%s7] sm:$0x3] %vm253, %v251
  %v255 = vld [vmem:[%s0] sm:$0xff]
  %v256 = vld [vmem:[%s0 + $0x8] sm:$0xff]
  %v259 = vmul.f32 %v238, %v255
  %v260 = vmul.f32 %v241, %v256
  %vm261 = vcmask 261120
  %v262 = vsel %vm261, %v259, 0.0
  %v263 = vrot.slane %v262, 4
  %v264 = vadd.f32 %v262, %v263
  %v265 = vrot.slane %v264, 2
  %v266 = vadd.f32 %v264, %v265
  %v267 = vrot.slane %v266, 1
  %v268 = vadd.f32 %v266, %v267
  %v269 = vsel %vm261, %v260, 0.0
  %v270 = vrot.slane %v269, 4
  %v271 = vadd.f32 %v269, %v270
  %v272 = vrot.slane %v271, 2
  %v273 = vadd.f32 %v271, %v272
  %v274 = vrot.slane %v273, 1
  %v275 = vadd.f32 %v273, %v274
  %v278 = vsel %vm175, %v275, %v268
  %vm280 = vcmask 254976
  %281 = vst.msk [vmem:[#allocation3] sm:$0x3] %vm280, %v278
  %v282 = vld [vmem:[#allocation2] sm:$0xff]
  %v283 = vld [vmem:[#allocation2 + $0x10] sm:$0xff]
  %v284 = vld [vmem:[%s3] sm:$0x1]
  %v286 = vlaneseq
  %v287 = vshrl.u32 %v286, 7
  %v288 = vsub.s32 0, %v287
  %v289 = vrot.slane %v284, %v288
  %v291 = vmul.f32 %v282, %v289
  %v292 = vmul.f32 %v283, %v289
  %295 = vrot.lane.b32.xlu0 %v291, 64
  %v296 = vpop.permute.xlu0 %295
  %297 = vrot.lane.b32.xlu0 %v292, 64
  %v298 = vpop.permute.xlu0 %297
  %v301 = vsel %vm130, %v296, 0.0
  %302 = vadd.xlane.f32.xlu0 %v301
  %v303 = vpop.xlane.xlu0 %302
  %v304 = vsel %vm130, %v298, 0.0
  %305 = vadd.xlane.f32.xlu0 %v304
  %v306 = vpop.xlane.xlu0 %305
  %v307 = vld [vmem:[%s4] sm:$0x1]
  %v309 = vlaneseq
  %v310 = vshrl.u32 %v309, 7
  %v311 = vsub.s32 0, %v310
  %v312 = vrot.slane %v307, %v311
  %313 = vset.pattern.permute.xlu0 1
  %314 = vperm.xlu0 %313, %v312
  %v315 = vpop.permute.xlu0 %314
  %v317 = vadd.f32 %v303, %v315
  %v318 = vadd.f32 %v306, %v315
  %v321 = vlaneseq
  %v322 = vshrl.u32 %v321, 7
  %v323 = vsub.s32 %v166, %v322
  %v324 = vrot.slane %v317, %v323
  %v325 = vlaneseq
  %v326 = vshrl.u32 %v325, 7
  %v327 = vsub.s32 %v166, %v326
  %v328 = vrot.slane %v318, %v327
  %v329 = vsel %vm175, %v328, %v324
  %v331 = vsel %vm178, %v329, -inf
  %332 = vmax.xlane.f32.xlu0 %v331
  %v333 = vpop.xlane.xlu0 %332
  %v335 = vlaneseq
  %v336 = vshrl.u32 %v335, 7
  %v337 = vsub.s32 0, %v336
  %v338 = vrot.slane %v333, %v337
  %v339 = vlaneseq
  %v340 = vshrl.u32 %v339, 7
  %v341 = vsub.s32 1, %v340
  %v342 = vrot.slane %v333, %v341
  %v345 = vsub.f32 %v317, %v338
  %v346 = vsub.f32 %v318, %v342
  %v347 = vmul.f32 %v345, 1.442695
  %v348 = vpow.pop %v347
  %v349 = vmul.f32 %v346, 1.442695
  %v350 = vpow.pop %v349
  %353 = vset.pattern.permute.xlu0 0
  %354 = vperm.xlu0 %353, %v348
  %v355 = vpop.permute.xlu0 %354
  %356 = vset.pattern.permute.xlu0 0
  %357 = vperm.xlu0 %356, %v350
  %v358 = vpop.permute.xlu0 %357
  %v359 = vlaneseq
  %v360 = vshrl.u32 %v359, 7
  %v361 = vsub.s32 %v166, %v360
  %v362 = vrot.slane %v355, %v361
  %v363 = vlaneseq
  %v364 = vshrl.u32 %v363, 7
  %v365 = vsub.s32 %v166, %v364
  %v366 = vrot.slane %v358, %v365
  %v367 = vsel %vm175, %v366, %v362
  %v369 = vsel %vm178, %v367, 0.0
  %370 = vadd.xlane.f32.xlu0 %v369
  %v371 = vpop.xlane.xlu0 %370
  %v372 = vrcp.pop %v371
  %v374 = vlaneseq
  %v375 = vshrl.u32 %v374, 7
  %v376 = vsub.s32 0, %v375
  %v377 = vrot.slane %v372, %v376
  %v378 = vlaneseq
  %v379 = vshrl.u32 %v378, 7
  %v380 = vsub.s32 1, %v379
  %v381 = vrot.slane %v372, %v380
  %v384 = vmul.f32 %v348, %v377
  %v385 = vmul.f32 %v350, %v381
  %388 = vset.pattern.permute.xlu0 0
  %389 = vperm.xlu0 %388, %v384
  %v390 = vpop.permute.xlu0 %389
  %391 = vset.pattern.permute.xlu0 0
  %392 = vperm.xlu0 %391, %v385
  %v393 = vpop.permute.xlu0 %392
  %v394 = vadd.s32 %v166, 4294967256
  %v395 = vlaneseq
  %v396 = vshrl.u32 %v395, 7
  %v397 = vsub.s32 %v394, %v396
  %v398 = vrot.slane %v390, %v397
  %v399 = vlaneseq
  %v400 = vshrl.u32 %v399, 7
  %v401 = vsub.s32 %v394, %v400
  %v402 = vrot.slane %v393, %v401
  %v403 = vsel %vm175, %v402, %v398
  %vm405 = vcmask 386368
  %406 = vst.msk [vmem:[%s7] sm:$0x3] %vm405, %v403
  %v407 = vld [vmem:[%s0] sm:$0xff]
  %v408 = vld [vmem:[%s0 + $0x8] sm:$0xff]
  %v411 = vmul.f32 %v390, %v407
  %v412 = vmul.f32 %v393, %v408
  %vm413 = vcmask 523520
  %v414 = vsel %vm413, %v411, 0.0
  %v415 = vrot.slane %v414, 4
  %v416 = vadd.f32 %v414, %v415
  %v417 = vrot.slane %v416, 2
  %v418 = vadd.f32 %v416, %v417
  %v419 = vrot.slane %v418, 1
  %v420 = vadd.f32 %v418, %v419
  %v421 = vsel %vm413, %v412, 0.0
  %v422 = vrot.slane %v421, 4
  %v423 = vadd.f32 %v421, %v422
  %v424 = vrot.slane %v423, 2
  %v425 = vadd.f32 %v423, %v424
  %v426 = vrot.slane %v425, 1
  %v427 = vadd.f32 %v425, %v426
  %v430 = vsel %vm175, %v427, %v420
  %vm432 = vcmask 517376
  %433 = vst.msk [vmem:[#allocation3] sm:$0x3] %vm432, %v430
  %v434 = vld [vmem:[#allocation2 + $0x8] sm:$0xff]
  %v435 = vld [vmem:[#allocation2 + $0x18] sm:$0xff]
  %v436 = vld [vmem:[%s3 + $0x1] sm:$0x1]
  %v438 = vlaneseq
  %v439 = vshrl.u32 %v438, 7
  %v440 = vsub.s32 0, %v439
  %v441 = vrot.slane %v436, %v440
  %v443 = vmul.f32 %v434, %v441
  %v444 = vmul.f32 %v435, %v441
  %v445 = vsel %vm130, %v443, 0.0
  %446 = vadd.xlane.f32.xlu0 %v445
  %v447 = vpop.xlane.xlu0 %446
  %v448 = vsel %vm130, %v444, 0.0
  %449 = vadd.xlane.f32.xlu0 %v448
  %v450 = vpop.xlane.xlu0 %449
  %v451 = vld [vmem:[%s4] sm:$0x1]
  %v453 = vlaneseq
  %v454 = vshrl.u32 %v453, 7
  %v455 = vsub.s32 0, %v454
  %v456 = vrot.slane %v451, %v455
  %457 = vset.pattern.permute.xlu0 2
  %458 = vperm.xlu0 %457, %v456
  %v459 = vpop.permute.xlu0 %458
  %v461 = vadd.f32 %v447, %v459
  %v462 = vadd.f32 %v450, %v459
  %v465 = vlaneseq
  %v466 = vshrl.u32 %v465, 7
  %v467 = vsub.s32 %v166, %v466
  %v468 = vrot.slane %v461, %v467
  %v469 = vlaneseq
  %v470 = vshrl.u32 %v469, 7
  %v471 = vsub.s32 %v166, %v470
  %v472 = vrot.slane %v462, %v471
  %v473 = vsel %vm175, %v472, %v468
  %v475 = vsel %vm178, %v473, -inf
  %476 = vmax.xlane.f32.xlu0 %v475
  %v477 = vpop.xlane.xlu0 %476
  %v479 = vlaneseq
  %v480 = vshrl.u32 %v479, 7
  %v481 = vsub.s32 0, %v480
  %v482 = vrot.slane %v477, %v481
  %v483 = vlaneseq
  %v484 = vshrl.u32 %v483, 7
  %v485 = vsub.s32 1, %v484
  %v486 = vrot.slane %v477, %v485
  %v489 = vsub.f32 %v461, %v482
  %v490 = vsub.f32 %v462, %v486
  %v491 = vmul.f32 %v489, 1.442695
  %v492 = vpow.pop %v491
  %v493 = vmul.f32 %v490, 1.442695
  %v494 = vpow.pop %v493
  %497 = vset.pattern.permute.xlu0 0
  %498 = vperm.xlu0 %497, %v492
  %v499 = vpop.permute.xlu0 %498
  %500 = vset.pattern.permute.xlu0 0
  %501 = vperm.xlu0 %500, %v494
  %v502 = vpop.permute.xlu0 %501
  %v503 = vlaneseq
  %v504 = vshrl.u32 %v503, 7
  %v505 = vsub.s32 %v166, %v504
  %v506 = vrot.slane %v499, %v505
  %v507 = vlaneseq
  %v508 = vshrl.u32 %v507, 7
  %v509 = vsub.s32 %v166, %v508
  %v510 = vrot.slane %v502, %v509
  %v511 = vsel %vm175, %v510, %v506
  %v513 = vsel %vm178, %v511, 0.0
  %514 = vadd.xlane.f32.xlu0 %v513
  %v515 = vpop.xlane.xlu0 %514
  %v516 = vrcp.pop %v515
  %v518 = vlaneseq
  %v519 = vshrl.u32 %v518, 7
  %v520 = vsub.s32 0, %v519
  %v521 = vrot.slane %v516, %v520
  %v522 = vlaneseq
  %v523 = vshrl.u32 %v522, 7
  %v524 = vsub.s32 1, %v523
  %v525 = vrot.slane %v516, %v524
  %v528 = vmul.f32 %v492, %v521
  %v529 = vmul.f32 %v494, %v525
  %532 = vset.pattern.permute.xlu0 0
  %533 = vperm.xlu0 %532, %v528
  %v534 = vpop.permute.xlu0 %533
  %535 = vset.pattern.permute.xlu0 0
  %536 = vperm.xlu0 %535, %v529
  %v537 = vpop.permute.xlu0 %536
  %v538 = vadd.s32 %v166, 4294967248
  %v539 = vlaneseq
  %v540 = vshrl.u32 %v539, 7
  %v541 = vsub.s32 %v538, %v540
  %v542 = vrot.slane %v534, %v541
  %v543 = vlaneseq
  %v544 = vshrl.u32 %v543, 7
  %v545 = vsub.s32 %v538, %v544
  %v546 = vrot.slane %v537, %v545
  %v547 = vsel %vm175, %v546, %v542
  %vm549 = vcmask 451968
  %550 = vst.msk [vmem:[%s7] sm:$0x3] %vm549, %v547
  %v551 = vld [vmem:[%s0] sm:$0xff]
  %v552 = vld [vmem:[%s0 + $0x8] sm:$0xff]
  %v555 = vmul.f32 %v534, %v551
  %v556 = vmul.f32 %v537, %v552
  %vm557 = vcmask 785920
  %v558 = vsel %vm557, %v555, 0.0
  %v559 = vrot.slane %v558, 4
  %v560 = vadd.f32 %v558, %v559
  %v561 = vrot.slane %v560, 2
  %v562 = vadd.f32 %v560, %v561
  %v563 = vrot.slane %v562, 1
  %v564 = vadd.f32 %v562, %v563
  %v565 = vsel %vm557, %v556, 0.0
  %v566 = vrot.slane %v565, 4
  %v567 = vadd.f32 %v565, %v566
  %v568 = vrot.slane %v567, 2
  %v569 = vadd.f32 %v567, %v568
  %v570 = vrot.slane %v569, 1
  %v571 = vadd.f32 %v569, %v570
  %v574 = vsel %vm175, %v571, %v564
  %vm576 = vcmask 779776
  %577 = vst.msk [vmem:[#allocation3] sm:$0x3] %vm576, %v574
  %v578 = vld [vmem:[#allocation3] sm:$0x3]
  %v579 = vpack.c.bf16 %v578, %v578
  %v580 = vld [vmem:[%s5] sm:$0xff]
  %v581 = vld [vmem:[%s5 + $0x8] sm:$0xff]
  %v582 = vld [vmem:[%s5 + $0x10] sm:$0xff]
  %v583 = vld [vmem:[%s5 + $0x18] sm:$0xff]
  %v584 = vld [vmem:[%s5 + $0x20] sm:$0xff]
  %v585 = vld [vmem:[%s5 + $0x28] sm:$0xff]
  %v586 = vld [vmem:[%s5 + $0x30] sm:$0xff]
  %v587 = vld [vmem:[%s5 + $0x38] sm:$0xff]
  %v588 = vld [vmem:[%s5 + $0x40] sm:$0xff]
  %v589 = vld [vmem:[%s5 + $0x48] sm:$0xff]
  %v590 = vld [vmem:[%s5 + $0x50] sm:$0xff]
  %v591 = vld [vmem:[%s5 + $0x58] sm:$0xff]
  %v592 = vpack.c.bf16 %v581, %v580
  %v593 = vpack.c.bf16 %v583, %v582
  %v594 = vpack.c.bf16 %v585, %v584
  %v595 = vpack.c.bf16 %v587, %v586
  %v596 = vpack.c.bf16 %v589, %v588
  %v597 = vpack.c.bf16 %v591, %v590
  %v598 = vld [vmem:[%s6] sm:$0x1]
  %v600 = vlaneseq
  %v601 = vshrl.u32 %v600, 7
  %v602 = vsub.s32 0, %v601
  %v603 = vrot.slane %v598, %v602
  %v606 = vsel %vm78, %v579, 0
  %608 = vmatprep.subr.bf16.mxu0 0
  %609 = vmatpush1.bf16.msra.mxu0 %v592
  %610 = vmatprep.subr.bf16.mxu0 0
  %611 = vmatpush1.bf16.msra.mxu0 %v593
  %612 = vmatprep.subr.bf16.mxu0 0
  %613 = vmatpush1.bf16.msra.mxu0 %v594
  %614 = vmatprep.subr.bf16.mxu0 0
  %615 = vmatpush1.bf16.msra.mxu0 %v595
  %616 = vmatprep.subr.bf16.mxu0 0
  %617 = vmatpush1.bf16.msra.mxu0 %v596
  %618 = vmatprep.subr.bf16.mxu0 0
  %619 = vmatpush1.bf16.msra.mxu0 %v597
  %620 = vmatprep.subr.bf16.mxu0 0
  %621 = vmatpush1.bf16.msra.mxu0 0
  %622 = vmatprep.subr.bf16.mxu0 0
  %623 = vmatpush1.bf16.msra.mxu0 0
  %624 = vmatprep.subr.bf16.mxu0 0
  %625 = vmatpush1.bf16.msra.mxu0 0
  %626 = vmatprep.subr.bf16.mxu0 0
  %627 = vmatpush1.bf16.msra.mxu0 0
  %628 = vmatprep.subr.bf16.mxu0 0
  %629 = vmatpush1.bf16.msra.mxu0 0
  %630 = vmatprep.subr.bf16.mxu0 0
  %631 = vmatpush1.bf16.msra.mxu0 0
  %632 = vmatprep.subr.bf16.mxu0 0
  %633 = vmatpush1.bf16.msra.mxu0 0
  %634 = vmatprep.subr.bf16.mxu0 0
  %635 = vmatpush1.bf16.msra.mxu0 0
  %636 = vmatprep.subr.bf16.mxu0 0
  %637 = vmatpush1.bf16.msra.mxu0 0
  %638 = vmatprep.subr.bf16.mxu0 0
  %639 = vmatpush1.bf16.msra.mxu0 0
  %640 = vmatprep.mubr.bf16.mxu0 0
  %641 = vmatmul.mubr.bf16.gmra.mrb[0].mxu0 %v606
  %v642 = vpop.f32.mrb[0].mxu0
  %v643 = vadd.f32 %v603, %v642
  %v644 = vpop.f32.mrb[0].mxu0
  %v645 = vpop.f32.mrb[0].mxu0
  %v646 = vpop.f32.mrb[0].mxu0
  %647 = vdwg.mxu0
  %v648 = vmax.f32 %v643, 0.0
  %649 = vst.msk [vmem:[%s7] sm:$0x3] %vm280, %v648
  // Predicated region
  $region30: #{_forward.1} parent=0 // pred_check
    _
  $region31: #{_forward.1} parent=0 // pred_check_branch
    %651 = sbr.rel (0) target = $region33
  $region32: #{_forward.1} parent=0 // pred_region
    _
  $region33: #{_forward.1} parent=0 // pred_fallthru
    _
  // Predicated region
  $region34: #{_forward.1} parent=0 // pred_check
    _
  $region35: #{_forward.1} parent=0 // pred_check_branch
    %653 = sbr.rel (0) target = $region37
  $region36: #{_forward.1} parent=0 // pred_region
    _
  $region37: #{_forward.1} parent=0 // pred_fallthru
    _

</llo_original>
